<compile_context>
chip_gen: v6e
topology: v6e:2x2x1
jax: 0.10.0
libtpu: 0.0.40
codegen_flags: <defaults>
</compile_context>

<pallas_src>
import math
from functools import partial

import jax
import jax.numpy as jnp
from jax import lax
from jax.experimental import pallas as pl
from jax.experimental.pallas import tpu as pltpu


# ----------------------------------------------------------------------------
# Kernel 1: fused QKV projection, head-major output layout, scale folded into q.
#   grid = (B, NQ)
#   x_ref: (1, TQ, C) bf16   w_ref: (C, 3C) bf16   b_ref: (1, 3C) f32
#   q/k/v out refs: (1, H, TQ, D) bf16
# ----------------------------------------------------------------------------
def _qkv_proj_kernel(x_ref, w_ref, b_ref, q_ref, k_ref, v_ref, *,
                     n_head, d_head, scale):
    x = x_ref[0]                                                   # (TQ, C) bf16
    # One wide MXU matmul: (TQ, C) x (C, 3C) -> (TQ, 3C), f32 accumulate.
    y = jnp.dot(x, w_ref[...], preferred_element_type=jnp.float32) + b_ref[...]
    c = n_head * d_head
    # Static per-head split at store time (head-major, attention-friendly).
    # TODO(synk): D<128 stores are lane-sparse; pack 2 heads per block (2D=128)
    # for full lane density on real GPT-2 shapes.
    for h in range(n_head):
        lo = h * d_head
        q_ref[0, h] = (y[:, lo:lo + d_head] * scale).astype(q_ref.dtype)
        k_ref[0, h] = y[:, c + lo:c + lo + d_head].astype(k_ref.dtype)
        v_ref[0, h] = y[:, 2 * c + lo:2 * c + lo + d_head].astype(v_ref.dtype)


# ----------------------------------------------------------------------------
# Kernel 2: flash attention (in-kernel kv loop) + fused output projection.
#   grid = (B, NQ, H)   ("parallel", "parallel", "arbitrary")
#   q_ref: (1, 1, TQ, D) bf16 (pre-scaled)   k_ref/v_ref: (1, 1, T, D) bf16
#   wp_ref: (H, D, C) bf16 (resident)        bp_ref: (1, C) f32 (resident)
#   o_ref:  (1, TQ, C) -- written once at the last head
#   scratch: out_sc (TQ, C) f32 output accumulator (sum over heads)
# ----------------------------------------------------------------------------
def _attn_proj_kernel(q_ref, k_ref, v_ref, wp_ref, bp_ref, o_ref, out_sc, *,
                      tq, tk):
    qi = pl.program_id(1)
    h = pl.program_id(2)
    nh = pl.num_programs(2)
    d = q_ref.shape[-1]

    q_start = qi * tq

    @pl.when(h == 0)
    def _init_out():
        out_sc[...] = jnp.zeros_like(out_sc)

    q = q_ref[0, 0]                    # (TQ, D) bf16, already scaled by 1/sqrt(D)
    k_hd = k_ref.at[0, 0]              # (T, D) ref-view (no load)
    v_hd = v_ref.at[0, 0]

    # Visible kv blocks for this q-tile:
    #   [0, num_full)      fully below the diagonal  -> no element-wise mask
    #   [num_full, num_vis) straddle the diagonal    -> element-wise mask
    num_full = (q_start + 1) // tk
    num_vis = (q_start + tq - 1) // tk + 1

    def make_step(apply_mask):
        def body(j, carry):
            m, l, acc = carry
            kv_start = pl.multiple_of(j * tk, tk)
            kh = k_hd[pl.ds(kv_start, tk), :]                       # (TK, D) bf16
            vh = v_hd[pl.ds(kv_start, tk), :]
            # q @ k^T via dot_general contracting on D (no explicit transpose).
            s = lax.dot_general(q, kh, (((1,), (1,)), ((), ())),
                                preferred_element_type=jnp.float32)  # (TQ, TK) f32
            if apply_mask:
                row = q_start + lax.broadcasted_iota(jnp.int32, (tq, tk), 0)
                col = kv_start + lax.broadcasted_iota(jnp.int32, (tq, tk), 1)
                s = jnp.where(row >= col, s, -1e30)   # finite "neg-inf", NaN-safe
            m_new = jnp.maximum(m, jnp.max(s, axis=-1, keepdims=True))
            alpha = jnp.exp(m - m_new)
            p = jnp.exp(s - m_new)
            l_new = alpha * l + jnp.sum(p, axis=-1, keepdims=True)
            acc_new = alpha * acc + jnp.dot(p.astype(vh.dtype), vh,
                                            preferred_element_type=jnp.float32)
            return m_new, l_new, acc_new
        return body

    carry0 = (jnp.full((tq, 1), -jnp.inf, jnp.float32),
              jnp.zeros((tq, 1), jnp.float32),
              jnp.zeros((tq, d), jnp.float32))
    carry = lax.fori_loop(0, num_full, make_step(apply_mask=False), carry0)
    m, l, acc = lax.fori_loop(num_full, num_vis, make_step(apply_mask=True), carry)

    # Per-head finalize: normalize once, accumulate into the C-wide output proj.
    y_h = acc * pl.reciprocal(l, approx=True)                       # (TQ, D) f32
    out_sc[...] += jnp.dot(y_h.astype(wp_ref.dtype), wp_ref[h],
                           preferred_element_type=jnp.float32)

    # Final write: add bias, cast, store lane-dense (TQ, C) tile once.
    @pl.when(h == nh - 1)
    def _finalize_out():
        o_ref[0] = (out_sc[...] + bp_ref[...]).astype(o_ref.dtype)


# ----------------------------------------------------------------------------
# Parameter prep -- call ONCE at parameter-load time, not per forward call.
# ----------------------------------------------------------------------------
def prepare_attention_params(w_attn, b_attn, w_proj, b_proj, n_head):
    """w_attn: (3C, C), b_attn: (3C,), w_proj: (C, C), b_proj: (C,)
    (PyTorch nn.Linear convention: weight is (out_features, in_features))."""
    three_c, C = w_attn.shape
    assert three_c == 3 * C and C % n_head == 0
    H, D = n_head, C // n_head
    return dict(
        w_qkv=jnp.transpose(w_attn).astype(jnp.bfloat16),            # (C, 3C)
        b_qkv=b_attn.reshape(1, 3 * C).astype(jnp.float32),          # (1, 3C)
        w_proj=jnp.transpose(w_proj).reshape(H, D, C).astype(jnp.bfloat16),  # (H,D,C)
        b_proj=b_proj.reshape(1, C).astype(jnp.float32),             # (1, C)
    )


# ----------------------------------------------------------------------------
# Wrapper
# ----------------------------------------------------------------------------
def causal_self_attention(x, params, *, n_head, q_block=256, kv_block=256):
    """x: (B, T, C) float32; params from prepare_attention_params()."""
    B, T, C = x.shape
    assert C % n_head == 0
    H, D = n_head, C // n_head
    tq = min(q_block, T)
    tk = min(kv_block, T)
    # TODO(synk): ragged T (not a multiple of the tiles) needs padding + masking.
    assert T % tq == 0 and T % tk == 0
    nq = T // tq

    xb = x.astype(jnp.bfloat16)

    # ---- Kernel 1: fused QKV projection into head-major bf16 q/k/v ----------
    qkv_kernel = partial(_qkv_proj_kernel, n_head=H, d_head=D,
                         scale=1.0 / math.sqrt(D))
    q, k, v = pl.pallas_call(
        qkv_kernel,
        out_shape=tuple(jax.ShapeDtypeStruct((B, H, T, D), jnp.bfloat16)
                        for _ in range(3)),
        grid=(B, nq),
        in_specs=[
            pl.BlockSpec((1, tq, C), lambda b, i: (b, i, 0)),     # x tile
            pl.BlockSpec((C, 3 * C), lambda b, i: (0, 0)),        # W_qkv (resident)
            pl.BlockSpec((1, 3 * C), lambda b, i: (0, 0)),        # bias (resident)
        ],
        out_specs=tuple(
            pl.BlockSpec((1, H, tq, D), lambda b, i: (b, 0, i, 0))
            for _ in range(3)),
        compiler_params=pltpu.CompilerParams(
            dimension_semantics=("parallel", "parallel"),
            vmem_limit_bytes=32 * 1024 * 1024),
    )(xb, params["w_qkv"], params["b_qkv"])

    # ---- Kernel 2: flash attention (in-kernel kv loop) + output projection --
    attn_kernel = partial(_attn_proj_kernel, tq=tq, tk=tk)
    out = pl.pallas_call(
        attn_kernel,
        out_shape=jax.ShapeDtypeStruct((B, T, C), x.dtype),
        grid=(B, nq, H),
        in_specs=[
            pl.BlockSpec((1, 1, tq, D), lambda b, i, h: (b, h, i, 0)),  # q tile
            pl.BlockSpec((1, 1, T, D),  lambda b, i, h: (b, h, 0, 0)),  # K (full, per head)
            pl.BlockSpec((1, 1, T, D),  lambda b, i, h: (b, h, 0, 0)),  # V (full, per head)
            pl.BlockSpec((H, D, C),     lambda b, i, h: (0, 0, 0)),     # Wproj (resident)
            pl.BlockSpec((1, C),        lambda b, i, h: (0, 0)),        # bproj (resident)
        ],
        out_specs=pl.BlockSpec((1, tq, C), lambda b, i, h: (b, i, 0)),
        scratch_shapes=[
            pltpu.VMEM((tq, C), jnp.float32),    # output accumulator (sum over heads)
        ],
        compiler_params=pltpu.CompilerParams(
            dimension_semantics=("parallel", "parallel", "arbitrary"),
            vmem_limit_bytes=32 * 1024 * 1024),
    )(q, k, v, params["w_proj"], params["b_proj"])
    return out


# ----------------------------------------------------------------------------
# Plain-JAX f32 reference mirroring the PyTorch forward exactly.
# ----------------------------------------------------------------------------
def _reference(x, w_attn, b_attn, w_proj, b_proj, n_head):
    B, T, C = x.shape
    D = C // n_head
    qkv = x @ w_attn.T + b_attn                   # (B, T, 3C)
    q, k, v = jnp.split(qkv, 3, axis=2)
    q = q.reshape(B, T, n_head, D).transpose(0, 2, 1, 3)
    k = k.reshape(B, T, n_head, D).transpose(0, 2, 1, 3)
    v = v.reshape(B, T, n_head, D).transpose(0, 2, 1, 3)
    s = jnp.einsum("bhqd,bhkd->bhqk", q, k) / math.sqrt(D)
    mask = jnp.tril(jnp.ones((T, T), dtype=bool))
    s = jnp.where(mask, s, -jnp.inf)
    p = jax.nn.softmax(s, axis=-1)
    y = jnp.einsum("bhqk,bhkd->bhqd", p, v)
    y = y.transpose(0, 2, 1, 3).reshape(B, T, C)
    return y @ w_proj.T + b_proj


def _run_case(key, B, T, C, n_head, q_block, kv_block):
    kx, k1, k2, k3, k4 = jax.random.split(key, 5)
    x = jax.random.normal(kx, (B, T, C), dtype=jnp.float32)
    w_attn = jax.random.normal(k1, (3 * C, C), dtype=jnp.float32) * 0.02
    b_attn = jax.random.normal(k2, (3 * C,), dtype=jnp.float32) * 0.02
    w_proj = jax.random.normal(k3, (C, C), dtype=jnp.float32) * 0.02
    b_proj = jax.random.normal(k4, (C,), dtype=jnp.float32) * 0.02

    params = prepare_attention_params(w_attn, b_attn, w_proj, b_proj, n_head)
    out = causal_self_attention(x, params, n_head=n_head,
                                q_block=q_block, kv_block=kv_block)
    out = jax.block_until_ready(out)

    ref = _reference(x, w_attn, b_attn, w_proj, b_proj, n_head)
    assert out.shape == (B, T, C)
    # bf16 MXU inputs + approx reciprocal -> slightly looser tolerance than f32.
    assert jnp.allclose(out, ref, atol=5e-3, rtol=5e-2), "mismatch vs reference"


if __name__ == "__main__":
    key = jax.random.PRNGKey(0)
    k_a, k_b = jax.random.split(key, 2)

    # Case 1: tiny single-tile config (B=2, T=8, C=32, 4 heads).
    _run_case(k_a, B=2, T=8, C=32, n_head=4, q_block=128, kv_block=128)

    # Case 2: multi-tile config exercising the in-kernel kv loop (full + masked
    # phases), multiple q tiles, and multi-head output accumulation
    # (B=2, T=32, C=32, 4 heads, tq=16, tk=8).
    _run_case(k_b, B=2, T=32, C=32, n_head=4, q_block=16, kv_block=8)

    print("KERNEL_OK")
</pallas_src>

<mosaic_0001>
module attributes {stable_mosaic.version = 11 : i64} {
  func.func @_qkv_proj_kernel(%arg0: i32, %arg1: i32, %arg2: memref<1x8x32xbf16, #tpu.memory_space<vmem>>, %arg3: memref<32x96xbf16, #tpu.memory_space<vmem>>, %arg4: memref<1x96xf32, #tpu.memory_space<vmem>>, %arg5: memref<1x4x8x8xbf16, #tpu.memory_space<vmem>>, %arg6: memref<1x4x8x8xbf16, #tpu.memory_space<vmem>>, %arg7: memref<1x4x8x8xbf16, #tpu.memory_space<vmem>>) attributes {dimension_semantics = [#tpu.dimension_semantics<parallel>, #tpu.dimension_semantics<parallel>], iteration_bounds = array<i64: 2, 1>, scalar_prefetch = 0 : i64, scratch_operands = 0 : i64, tpu.core_type = #tpu.core_type<tc>, window_params = [{transform_indices = @transform_0, window_bounds = array<i64: 1, 8, 32>}, {pipeline_mode = #tpu.pipeline_mode<synchronous>, transform_indices = @transform_1, window_bounds = array<i64: 32, 96>}, {pipeline_mode = #tpu.pipeline_mode<synchronous>, transform_indices = @transform_2, window_bounds = array<i64: 1, 96>}, {transform_indices = @transform_3, window_bounds = array<i64: 1, 4, 8, 8>}, {transform_indices = @transform_4, window_bounds = array<i64: 1, 4, 8, 8>}, {transform_indices = @transform_5, window_bounds = array<i64: 1, 4, 8, 8>}]} {
    %c0 = arith.constant 0 : index
    %c0_0 = arith.constant 0 : index
    %c0_1 = arith.constant 0 : index
    %0 = vector.load %arg2[%c0, %c0_0, %c0_1] : memref<1x8x32xbf16, #tpu.memory_space<vmem>>, vector<1x8x32xbf16>
    %1 = vector.shape_cast %0 : vector<1x8x32xbf16> to vector<8x32xbf16>
    %c0_2 = arith.constant 0 : index
    %c0_3 = arith.constant 0 : index
    %2 = vector.load %arg3[%c0_2, %c0_3] : memref<32x96xbf16, #tpu.memory_space<vmem>>, vector<32x96xbf16>
    %cst = arith.constant dense<0.000000e+00> : vector<8x96xf32>
    %3 = tpu.matmul %1, %2, %cst {dimension_numbers = #tpu.dot_dimension_numbers<[1], [0], [0], [1], [0, 0, 1, 1], [], []>} : vector<8x32xbf16>, vector<32x96xbf16>, vector<8x96xf32> -> vector<8x96xf32>
    %c0_4 = arith.constant 0 : index
    %c0_5 = arith.constant 0 : index
    %4 = vector.load %arg4[%c0_4, %c0_5] : memref<1x96xf32, #tpu.memory_space<vmem>>, vector<1x96xf32>
    %5 = vector.broadcast %4 : vector<1x96xf32> to vector<8x96xf32>
    %6 = arith.addf %3, %5 : vector<8x96xf32>
    %7 = vector.extract_strided_slice %6 {offsets = [0, 0], sizes = [8, 8], strides = [1, 1]} : vector<8x96xf32> to vector<8x8xf32>
    %cst_6 = arith.constant 0.353553385 : f32
    %8 = vector.broadcast %cst_6 : f32 to vector<8x8xf32>
    %9 = arith.mulf %7, %8 : vector<8x8xf32>
    %10 = arith.truncf %9 : vector<8x8xf32> to vector<8x8xbf16>
    %c0_7 = arith.constant 0 : index
    %c0_8 = arith.constant 0 : index
    %c0_9 = arith.constant 0 : index
    %c0_10 = arith.constant 0 : index
    %11 = vector.load %arg5[%c0_7, %c0_8, %c0_9, %c0_10] : memref<1x4x8x8xbf16, #tpu.memory_space<vmem>>, vector<1x1x8x8xbf16>
    %12 = vector.shape_cast %11 : vector<1x1x8x8xbf16> to vector<8x8xbf16>
    %13 = vector.shape_cast %10 : vector<8x8xbf16> to vector<1x1x8x8xbf16>
    tpu.vector_store %arg5[%c0_7, %c0_8, %c0_9, %c0_10], %13 {strides = array<i32>} : memref<1x4x8x8xbf16, #tpu.memory_space<vmem>>, vector<1x1x8x8xbf16>,
    %14 = vector.extract_strided_slice %6 {offsets = [0, 32], sizes = [8, 8], strides = [1, 1]} : vector<8x96xf32> to vector<8x8xf32>
    %15 = arith.truncf %14 : vector<8x8xf32> to vector<8x8xbf16>
    %c0_11 = arith.constant 0 : index
    %c0_12 = arith.constant 0 : index
    %c0_13 = arith.constant 0 : index
    %c0_14 = arith.constant 0 : index
    %16 = vector.load %arg6[%c0_11, %c0_12, %c0_13, %c0_14] : memref<1x4x8x8xbf16, #tpu.memory_space<vmem>>, vector<1x1x8x8xbf16>
    %17 = vector.shape_cast %16 : vector<1x1x8x8xbf16> to vector<8x8xbf16>
    %18 = vector.shape_cast %15 : vector<8x8xbf16> to vector<1x1x8x8xbf16>
    tpu.vector_store %arg6[%c0_11, %c0_12, %c0_13, %c0_14], %18 {strides = array<i32>} : memref<1x4x8x8xbf16, #tpu.memory_space<vmem>>, vector<1x1x8x8xbf16>,
    %19 = vector.extract_strided_slice %6 {offsets = [0, 64], sizes = [8, 8], strides = [1, 1]} : vector<8x96xf32> to vector<8x8xf32>
    %20 = arith.truncf %19 : vector<8x8xf32> to vector<8x8xbf16>
    %c0_15 = arith.constant 0 : index
    %c0_16 = arith.constant 0 : index
    %c0_17 = arith.constant 0 : index
    %c0_18 = arith.constant 0 : index
    %21 = vector.load %arg7[%c0_15, %c0_16, %c0_17, %c0_18] : memref<1x4x8x8xbf16, #tpu.memory_space<vmem>>, vector<1x1x8x8xbf16>
    %22 = vector.shape_cast %21 : vector<1x1x8x8xbf16> to vector<8x8xbf16>
    %23 = vector.shape_cast %20 : vector<8x8xbf16> to vector<1x1x8x8xbf16>
    tpu.vector_store %arg7[%c0_15, %c0_16, %c0_17, %c0_18], %23 {strides = array<i32>} : memref<1x4x8x8xbf16, #tpu.memory_space<vmem>>, vector<1x1x8x8xbf16>,
    %24 = vector.extract_strided_slice %6 {offsets = [0, 8], sizes = [8, 8], strides = [1, 1]} : vector<8x96xf32> to vector<8x8xf32>
    %cst_19 = arith.constant 0.353553385 : f32
    %25 = vector.broadcast %cst_19 : f32 to vector<8x8xf32>
    %26 = arith.mulf %24, %25 : vector<8x8xf32>
    %27 = arith.truncf %26 : vector<8x8xf32> to vector<8x8xbf16>
    %c0_20 = arith.constant 0 : index
    %c1 = arith.constant 1 : index
    %c0_21 = arith.constant 0 : index
    %c0_22 = arith.constant 0 : index
    %28 = vector.load %arg5[%c0_20, %c1, %c0_21, %c0_22] : memref<1x4x8x8xbf16, #tpu.memory_space<vmem>>, vector<1x1x8x8xbf16>
    %29 = vector.shape_cast %28 : vector<1x1x8x8xbf16> to vector<8x8xbf16>
    %30 = vector.shape_cast %27 : vector<8x8xbf16> to vector<1x1x8x8xbf16>
    tpu.vector_store %arg5[%c0_20, %c1, %c0_21, %c0_22], %30 {strides = array<i32>} : memref<1x4x8x8xbf16, #tpu.memory_space<vmem>>, vector<1x1x8x8xbf16>,
    %31 = vector.extract_strided_slice %6 {offsets = [0, 40], sizes = [8, 8], strides = [1, 1]} : vector<8x96xf32> to vector<8x8xf32>
    %32 = arith.truncf %31 : vector<8x8xf32> to vector<8x8xbf16>
    %c0_23 = arith.constant 0 : index
    %c1_24 = arith.constant 1 : index
    %c0_25 = arith.constant 0 : index
    %c0_26 = arith.constant 0 : index
    %33 = vector.load %arg6[%c0_23, %c1_24, %c0_25, %c0_26] : memref<1x4x8x8xbf16, #tpu.memory_space<vmem>>, vector<1x1x8x8xbf16>
    %34 = vector.shape_cast %33 : vector<1x1x8x8xbf16> to vector<8x8xbf16>
    %35 = vector.shape_cast %32 : vector<8x8xbf16> to vector<1x1x8x8xbf16>
    tpu.vector_store %arg6[%c0_23, %c1_24, %c0_25, %c0_26], %35 {strides = array<i32>} : memref<1x4x8x8xbf16, #tpu.memory_space<vmem>>, vector<1x1x8x8xbf16>,
    %36 = vector.extract_strided_slice %6 {offsets = [0, 72], sizes = [8, 8], strides = [1, 1]} : vector<8x96xf32> to vector<8x8xf32>
    %37 = arith.truncf %36 : vector<8x8xf32> to vector<8x8xbf16>
    %c0_27 = arith.constant 0 : index
    %c1_28 = arith.constant 1 : index
    %c0_29 = arith.constant 0 : index
    %c0_30 = arith.constant 0 : index
    %38 = vector.load %arg7[%c0_27, %c1_28, %c0_29, %c0_30] : memref<1x4x8x8xbf16, #tpu.memory_space<vmem>>, vector<1x1x8x8xbf16>
    %39 = vector.shape_cast %38 : vector<1x1x8x8xbf16> to vector<8x8xbf16>
    %40 = vector.shape_cast %37 : vector<8x8xbf16> to vector<1x1x8x8xbf16>
    tpu.vector_store %arg7[%c0_27, %c1_28, %c0_29, %c0_30], %40 {strides = array<i32>} : memref<1x4x8x8xbf16, #tpu.memory_space<vmem>>, vector<1x1x8x8xbf16>,
    %41 = vector.extract_strided_slice %6 {offsets = [0, 16], sizes = [8, 8], strides = [1, 1]} : vector<8x96xf32> to vector<8x8xf32>
    %cst_31 = arith.constant 0.353553385 : f32
    %42 = vector.broadcast %cst_31 : f32 to vector<8x8xf32>
    %43 = arith.mulf %41, %42 : vector<8x8xf32>
    %44 = arith.truncf %43 : vector<8x8xf32> to vector<8x8xbf16>
    %c0_32 = arith.constant 0 : index
    %c2 = arith.constant 2 : index
    %c0_33 = arith.constant 0 : index
    %c0_34 = arith.constant 0 : index
    %45 = vector.load %arg5[%c0_32, %c2, %c0_33, %c0_34] : memref<1x4x8x8xbf16, #tpu.memory_space<vmem>>, vector<1x1x8x8xbf16>
    %46 = vector.shape_cast %45 : vector<1x1x8x8xbf16> to vector<8x8xbf16>
    %47 = vector.shape_cast %44 : vector<8x8xbf16> to vector<1x1x8x8xbf16>
    tpu.vector_store %arg5[%c0_32, %c2, %c0_33, %c0_34], %47 {strides = array<i32>} : memref<1x4x8x8xbf16, #tpu.memory_space<vmem>>, vector<1x1x8x8xbf16>,
    %48 = vector.extract_strided_slice %6 {offsets = [0, 48], sizes = [8, 8], strides = [1, 1]} : vector<8x96xf32> to vector<8x8xf32>
    %49 = arith.truncf %48 : vector<8x8xf32> to vector<8x8xbf16>
    %c0_35 = arith.constant 0 : index
    %c2_36 = arith.constant 2 : index
    %c0_37 = arith.constant 0 : index
    %c0_38 = arith.constant 0 : index
    %50 = vector.load %arg6[%c0_35, %c2_36, %c0_37, %c0_38] : memref<1x4x8x8xbf16, #tpu.memory_space<vmem>>, vector<1x1x8x8xbf16>
    %51 = vector.shape_cast %50 : vector<1x1x8x8xbf16> to vector<8x8xbf16>
    %52 = vector.shape_cast %49 : vector<8x8xbf16> to vector<1x1x8x8xbf16>
    tpu.vector_store %arg6[%c0_35, %c2_36, %c0_37, %c0_38], %52 {strides = array<i32>} : memref<1x4x8x8xbf16, #tpu.memory_space<vmem>>, vector<1x1x8x8xbf16>,
    %53 = vector.extract_strided_slice %6 {offsets = [0, 80], sizes = [8, 8], strides = [1, 1]} : vector<8x96xf32> to vector<8x8xf32>
    %54 = arith.truncf %53 : vector<8x8xf32> to vector<8x8xbf16>
    %c0_39 = arith.constant 0 : index
    %c2_40 = arith.constant 2 : index
    %c0_41 = arith.constant 0 : index
    %c0_42 = arith.constant 0 : index
    %55 = vector.load %arg7[%c0_39, %c2_40, %c0_41, %c0_42] : memref<1x4x8x8xbf16, #tpu.memory_space<vmem>>, vector<1x1x8x8xbf16>
    %56 = vector.shape_cast %55 : vector<1x1x8x8xbf16> to vector<8x8xbf16>
    %57 = vector.shape_cast %54 : vector<8x8xbf16> to vector<1x1x8x8xbf16>
    tpu.vector_store %arg7[%c0_39, %c2_40, %c0_41, %c0_42], %57 {strides = array<i32>} : memref<1x4x8x8xbf16, #tpu.memory_space<vmem>>, vector<1x1x8x8xbf16>,
    %58 = vector.extract_strided_slice %6 {offsets = [0, 24], sizes = [8, 8], strides = [1, 1]} : vector<8x96xf32> to vector<8x8xf32>
    %cst_43 = arith.constant 0.353553385 : f32
    %59 = vector.broadcast %cst_43 : f32 to vector<8x8xf32>
    %60 = arith.mulf %58, %59 : vector<8x8xf32>
    %61 = arith.truncf %60 : vector<8x8xf32> to vector<8x8xbf16>
    %c0_44 = arith.constant 0 : index
    %c3 = arith.constant 3 : index
    %c0_45 = arith.constant 0 : index
    %c0_46 = arith.constant 0 : index
    %62 = vector.load %arg5[%c0_44, %c3, %c0_45, %c0_46] : memref<1x4x8x8xbf16, #tpu.memory_space<vmem>>, vector<1x1x8x8xbf16>
    %63 = vector.shape_cast %62 : vector<1x1x8x8xbf16> to vector<8x8xbf16>
    %64 = vector.shape_cast %61 : vector<8x8xbf16> to vector<1x1x8x8xbf16>
    tpu.vector_store %arg5[%c0_44, %c3, %c0_45, %c0_46], %64 {strides = array<i32>} : memref<1x4x8x8xbf16, #tpu.memory_space<vmem>>, vector<1x1x8x8xbf16>,
    %65 = vector.extract_strided_slice %6 {offsets = [0, 56], sizes = [8, 8], strides = [1, 1]} : vector<8x96xf32> to vector<8x8xf32>
    %66 = arith.truncf %65 : vector<8x8xf32> to vector<8x8xbf16>
    %c0_47 = arith.constant 0 : index
    %c3_48 = arith.constant 3 : index
    %c0_49 = arith.constant 0 : index
    %c0_50 = arith.constant 0 : index
    %67 = vector.load %arg6[%c0_47, %c3_48, %c0_49, %c0_50] : memref<1x4x8x8xbf16, #tpu.memory_space<vmem>>, vector<1x1x8x8xbf16>
    %68 = vector.shape_cast %67 : vector<1x1x8x8xbf16> to vector<8x8xbf16>
    %69 = vector.shape_cast %66 : vector<8x8xbf16> to vector<1x1x8x8xbf16>
    tpu.vector_store %arg6[%c0_47, %c3_48, %c0_49, %c0_50], %69 {strides = array<i32>} : memref<1x4x8x8xbf16, #tpu.memory_space<vmem>>, vector<1x1x8x8xbf16>,
    %70 = vector.extract_strided_slice %6 {offsets = [0, 88], sizes = [8, 8], strides = [1, 1]} : vector<8x96xf32> to vector<8x8xf32>
    %71 = arith.truncf %70 : vector<8x8xf32> to vector<8x8xbf16>
    %c0_51 = arith.constant 0 : index
    %c3_52 = arith.constant 3 : index
    %c0_53 = arith.constant 0 : index
    %c0_54 = arith.constant 0 : index
    %72 = vector.load %arg7[%c0_51, %c3_52, %c0_53, %c0_54] : memref<1x4x8x8xbf16, #tpu.memory_space<vmem>>, vector<1x1x8x8xbf16>
    %73 = vector.shape_cast %72 : vector<1x1x8x8xbf16> to vector<8x8xbf16>
    %74 = vector.shape_cast %71 : vector<8x8xbf16> to vector<1x1x8x8xbf16>
    tpu.vector_store %arg7[%c0_51, %c3_52, %c0_53, %c0_54], %74 {strides = array<i32>} : memref<1x4x8x8xbf16, #tpu.memory_space<vmem>>, vector<1x1x8x8xbf16>,
    return
  }
  func.func @transform_0(%arg0: i32, %arg1: i32) -> (i32, i32, i32) {
    %c0_i32 = arith.constant 0 : i32
    %c0_i32_0 = arith.constant 0 : i32
    return %arg0, %arg1, %c0_i32 : i32, i32, i32
  }
  func.func @transform_1(%arg0: i32, %arg1: i32) -> (i32, i32) {
    %c0_i32 = arith.constant 0 : i32
    %c0_i32_0 = arith.constant 0 : i32
    %c0_i32_1 = arith.constant 0 : i32
    return %c0_i32, %c0_i32_0 : i32, i32
  }
  func.func @transform_2(%arg0: i32, %arg1: i32) -> (i32, i32) {
    %c0_i32 = arith.constant 0 : i32
    %c0_i32_0 = arith.constant 0 : i32
    %c0_i32_1 = arith.constant 0 : i32
    return %c0_i32, %c0_i32_0 : i32, i32
  }
  func.func @transform_3(%arg0: i32, %arg1: i32) -> (i32, i32, i32, i32) {
    %c0_i32 = arith.constant 0 : i32
    %c0_i32_0 = arith.constant 0 : i32
    %c0_i32_1 = arith.constant 0 : i32
    return %arg0, %c0_i32, %arg1, %c0_i32_0 : i32, i32, i32, i32
  }
  func.func @transform_4(%arg0: i32, %arg1: i32) -> (i32, i32, i32, i32) {
    %c0_i32 = arith.constant 0 : i32
    %c0_i32_0 = arith.constant 0 : i32
    %c0_i32_1 = arith.constant 0 : i32
    return %arg0, %c0_i32, %arg1, %c0_i32_0 : i32, i32, i32, i32
  }
  func.func @transform_5(%arg0: i32, %arg1: i32) -> (i32, i32, i32, i32) {
    %c0_i32 = arith.constant 0 : i32
    %c0_i32_0 = arith.constant 0 : i32
    %c0_i32_1 = arith.constant 0 : i32
    return %arg0, %c0_i32, %arg1, %c0_i32_0 : i32, i32, i32, i32
  }
}

</mosaic_0001>

<llo_original>
// kernel: tpu_custom_call.1
$region0: #{tpu_custom_call.1}
  #allocation0 [shape = 'u32[]', space=smem, size = 0x4, offset = 0x4, fixed_abs, tag = 'smem constant byte address 0x4 - core index']
  #allocation1 [shape = 'u32[144,128]{1,0:T(1,128)}', space=vmem, size = 0x12000, scoped, tag = 'internal scratch']
  %s0 = inlined_call_operand.hbm [shape: bf16[2,8,32], index: 0, kind: input, shape index: {}]
  %s1 = inlined_call_operand.hbm [shape: bf16[32,96], index: 1, kind: input, shape index: {}]
  %s2 = inlined_call_operand.vmem [shape: f32[1,96], index: 2, kind: input, shape index: {}]
  %s3 = inlined_call_operand.hbm [shape: bf16[2,4,8,8], index: 3, kind: output, shape index: {0}]
  %s4 = inlined_call_operand.hbm [shape: bf16[2,4,8,8], index: 4, kind: output, shape index: {1}]
  %s5 = inlined_call_operand.hbm [shape: bf16[2,4,8,8], index: 5, kind: output, shape index: {2}]
  %6 = xla_tuple %s3, %s4, %s5
  %s7 = sld [smem:[#allocation0]]
  $region69: #{tpu_custom_call.1} parent=0
    _
  %s9 = ssub.s32 1, %s7
  %s10 = scalar_select 0, %s9, %s7
  $region1: #{tpu_custom_call.1} parent=0
    #allocation2 [shape = 'u8[4096]{0}', space=vmem, size = 0x1000, scoped, tag = 'input window, operand 0']
    #allocation3 [shape = 's32[2]{0}', space=sflag, size = 0x8, scoped, tag = 'scoped memory for tpu_custom_call.1']
    #allocation4 [shape = 's32[2]{0}', space=sflag, size = 0x8, scoped, tag = 'scoped memory for tpu_custom_call.1']
    #allocation5 [shape = 'u8[8192]{0}', space=vmem, size = 0x2000, scoped, tag = 'input window, operand 1, single buffered']
    #allocation6 [shape = 's32[1]{0}', space=sflag, size = 0x4, scoped, tag = 'scoped memory for tpu_custom_call.1']
    #allocation7 [shape = 'u8[16384]{0}', space=vmem, size = 0x4000, scoped, tag = 'output window, operand 0']
    #allocation8 [shape = 'u8[16384]{0}', space=vmem, size = 0x4000, scoped, tag = 'output window, operand 1']
    #allocation9 [shape = 's32[2]{0}', space=sflag, size = 0x8, scoped, tag = 'scoped memory for tpu_custom_call.1']
    #allocation10 [shape = 'u8[16384]{0}', space=vmem, size = 0x4000, scoped, tag = 'output window, operand 2']
    %11 = vsyncpa [#allocation3], 0
    %s12 = scalar_lea.sflag [#allocation3], 1
    %13 = vsyncpa %s12, 0
    %14 = vsyncpa [#allocation6], 0
    %15 = vsyncpa [#allocation4], 0
    %s16 = scalar_lea.sflag [#allocation4], 1
    %17 = vsyncpa %s16, 0
    %18 = vsyncpa [#allocation9], 0
    %s19 = scalar_lea.sflag [#allocation9], 1
    %20 = vsyncpa %s19, 0
    loop: start=0, step=1, limit=4
    $region2: #{tpu_custom_call.1} parent=1 // loop_pre_header
      _
    $region3: #{tpu_custom_call.1} parent=1 // loop_header
      %s22 = sphi 0, %s26
      %p23 = scmp.ge.s32.totalorder %s22, 4
      %s29 = sphi 0, %s41
      %s30 = sphi 0, %s37
      %s31 = sphi 0, %s29
      %s32 = sphi 0, %s30
      %s33 = sphi 0, %s31
      %s34 = sphi 0, %s32
      %s46 = sphi 0, %s48
      %s49 = sphi 0, %s46
      %s50 = sphi 0, %s49
      %s66 = sphi 0, %s50
      %s70 = sphi 0, %s70
      %s72 = sphi 0, %s70
      %s73 = sphi 0, %s72
      %s87 = sphi 0, %s73
      %s91 = sphi 0, %s91
      %s93 = sphi 0, %s91
      %s94 = sphi 0, %s93
      %s108 = sphi 0, %s94
      %s116 = sphi 0, %s118
      %s119 = sphi 0, %s116
      %s120 = sphi 0, %s119
      %s136 = sphi 0, %s120
      %s144 = sphi 0, %s146
      %s147 = sphi 0, %s144
      %s148 = sphi 0, %s147
      %s164 = sphi 0, %s148
      %s172 = sphi 0, %s174
      %s175 = sphi 0, %s172
      %s176 = sphi 0, %s175
      %s192 = sphi 0, %s176
    $region4: #{tpu_custom_call.1} parent=1 // loop_header_branch
      %25 = sbr.rel (%p23) target = $region8
    $region5: #{tpu_custom_call.1} parent=1 // loop_body
      %s27 = ssub.s32 %s22, 1
      %s28 = ssub.s32 %s22, 2
      %s35 = sadd.s32 1, %s30
      %p36 = scmp.ge.s32.totalorder %s35, 1
      %s37 = scalar_select %p36, 0, %s35
      %s38 = sadd.s32 1, %s29
      %s39 = scalar_select %p36, %s38, %s29
      %p40 = scmp.ge.s32.totalorder %s39, 2
      %s41 = scalar_select %p40, 0, %s39
      %s42 = ssub.s32 %s29, %s41
      %s43 = ssub.s32 %s30, %s37
      %s44 = sor.u32 %s42, %s43
      %p45 = scmp.eq.s32.totalorder %s44, 0
      %s47 = sadd.s32 %s46, 1
      %s48 = scalar_select %p45, %s46, %s47
      %p51 = pneg %p45
      %p52 = scmp.eq.s32.totalorder %s22, 1
      %p53 = por %p51, %p52
      %p54 = scmp.ne.s32.totalorder %s46, %s49
      %p55 = scmp.eq.s32.totalorder %s22, 0
      %p56 = por %p54, %p55
      %p57 = scmp.ne.s32.totalorder %s46, %s49
      %p58 = scmp.eq.s32.totalorder %s27, 1
      %p59 = por %p57, %p58
      %p60 = scmp.ne.s32.totalorder %s49, %s50
      %p61 = scmp.eq.s32.totalorder %s27, 0
      %p62 = por %p60, %p61
      %p63 = scmp.ne.s32.totalorder %s49, %s50
      %p64 = scmp.eq.s32.totalorder %s28, 1
      %p65 = por %p63, %p64
      %p67 = scmp.ne.s32.totalorder %s50, %s66
      %p68 = scmp.eq.s32.totalorder %s28, 0
      %p69 = por %p67, %p68
      %s71 = sadd.s32 %s70, 1
      %p74 = scmp.eq.s32.totalorder %s22, 1
      %p75 = scmp.ne.s32.totalorder %s70, %s72
      %p76 = scmp.eq.s32.totalorder %s22, 0
      %p77 = por %p75, %p76
      %p78 = scmp.ne.s32.totalorder %s70, %s72
      %p79 = scmp.eq.s32.totalorder %s27, 1
      %p80 = por %p78, %p79
      %p81 = scmp.ne.s32.totalorder %s72, %s73
      %p82 = scmp.eq.s32.totalorder %s27, 0
      %p83 = por %p81, %p82
      %p84 = scmp.ne.s32.totalorder %s72, %s73
      %p85 = scmp.eq.s32.totalorder %s28, 1
      %p86 = por %p84, %p85
      %p88 = scmp.ne.s32.totalorder %s73, %s87
      %p89 = scmp.eq.s32.totalorder %s28, 0
      %p90 = por %p88, %p89
      %s92 = sadd.s32 %s91, 1
      %p95 = scmp.eq.s32.totalorder %s22, 1
      %p96 = scmp.ne.s32.totalorder %s91, %s93
      %p97 = scmp.eq.s32.totalorder %s22, 0
      %p98 = por %p96, %p97
      %p99 = scmp.ne.s32.totalorder %s91, %s93
      %p100 = scmp.eq.s32.totalorder %s27, 1
      %p101 = por %p99, %p100
      %p102 = scmp.ne.s32.totalorder %s93, %s94
      %p103 = scmp.eq.s32.totalorder %s27, 0
      %p104 = por %p102, %p103
      %p105 = scmp.ne.s32.totalorder %s93, %s94
      %p106 = scmp.eq.s32.totalorder %s28, 1
      %p107 = por %p105, %p106
      %p109 = scmp.ne.s32.totalorder %s94, %s108
      %p110 = scmp.eq.s32.totalorder %s28, 0
      %p111 = por %p109, %p110
      %s112 = ssub.s32 %s29, %s41
      %s113 = ssub.s32 %s30, %s37
      %s114 = sor.u32 %s112, %s113
      %p115 = scmp.eq.s32.totalorder %s114, 0
      %s117 = sadd.s32 %s116, 1
      %s118 = scalar_select %p115, %s116, %s117
      %p121 = pneg %p115
      %p122 = scmp.eq.s32.totalorder %s22, 1
      %p123 = por %p121, %p122
      %p124 = scmp.ne.s32.totalorder %s116, %s119
      %p125 = scmp.eq.s32.totalorder %s22, 0
      %p126 = por %p124, %p125
      %p127 = scmp.ne.s32.totalorder %s116, %s119
      %p128 = scmp.eq.s32.totalorder %s27, 1
      %p129 = por %p127, %p128
      %p130 = scmp.ne.s32.totalorder %s119, %s120
      %p131 = scmp.eq.s32.totalorder %s27, 0
      %p132 = por %p130, %p131
      %p133 = scmp.ne.s32.totalorder %s119, %s120
      %p134 = scmp.eq.s32.totalorder %s28, 1
      %p135 = por %p133, %p134
      %p137 = scmp.ne.s32.totalorder %s120, %s136
      %p138 = scmp.eq.s32.totalorder %s28, 0
      %p139 = por %p137, %p138
      %s140 = ssub.s32 %s29, %s41
      %s141 = ssub.s32 %s30, %s37
      %s142 = sor.u32 %s140, %s141
      %p143 = scmp.eq.s32.totalorder %s142, 0
      %s145 = sadd.s32 %s144, 1
      %s146 = scalar_select %p143, %s144, %s145
      %p149 = pneg %p143
      %p150 = scmp.eq.s32.totalorder %s22, 1
      %p151 = por %p149, %p150
      %p152 = scmp.ne.s32.totalorder %s144, %s147
      %p153 = scmp.eq.s32.totalorder %s22, 0
      %p154 = por %p152, %p153
      %p155 = scmp.ne.s32.totalorder %s144, %s147
      %p156 = scmp.eq.s32.totalorder %s27, 1
      %p157 = por %p155, %p156
      %p158 = scmp.ne.s32.totalorder %s147, %s148
      %p159 = scmp.eq.s32.totalorder %s27, 0
      %p160 = por %p158, %p159
      %p161 = scmp.ne.s32.totalorder %s147, %s148
      %p162 = scmp.eq.s32.totalorder %s28, 1
      %p163 = por %p161, %p162
      %p165 = scmp.ne.s32.totalorder %s148, %s164
      %p166 = scmp.eq.s32.totalorder %s28, 0
      %p167 = por %p165, %p166
      %s168 = ssub.s32 %s29, %s41
      %s169 = ssub.s32 %s30, %s37
      %s170 = sor.u32 %s168, %s169
      %p171 = scmp.eq.s32.totalorder %s170, 0
      %s173 = sadd.s32 %s172, 1
      %s174 = scalar_select %p171, %s172, %s173
      %p177 = pneg %p171
      %p178 = scmp.eq.s32.totalorder %s22, 1
      %p179 = por %p177, %p178
      %p180 = scmp.ne.s32.totalorder %s172, %s175
      %p181 = scmp.eq.s32.totalorder %s22, 0
      %p182 = por %p180, %p181
      %p183 = scmp.ne.s32.totalorder %s172, %s175
      %p184 = scmp.eq.s32.totalorder %s27, 1
      %p185 = por %p183, %p184
      %p186 = scmp.ne.s32.totalorder %s175, %s176
      %p187 = scmp.eq.s32.totalorder %s27, 0
      %p188 = por %p186, %p187
      %p189 = scmp.ne.s32.totalorder %s175, %s176
      %p190 = scmp.eq.s32.totalorder %s28, 1
      %p191 = por %p189, %p190
      %p193 = scmp.ne.s32.totalorder %s176, %s192
      %p194 = scmp.eq.s32.totalorder %s28, 0
      %p195 = por %p193, %p194
      %p196 = scmp.le.s32.totalorder 1, %s22
      %p197 = scmp.lt.s32.totalorder %s22, 3
      %p198 = pnand %p196, %p197
      %p199 = pneg %p198
      // Predicated region
      $region9: #{tpu_custom_call.1} parent=5 // pred_check
        _
      $region10: #{tpu_custom_call.1} parent=5 // pred_check_branch
        %201 = sbr.rel (%p198) target = $region12
      $region11: #{tpu_custom_call.1} parent=5 // pred_region
        %s202 = ssub.s32 %s22, 1
        // Predicated region
        $region13: #{tpu_custom_call.1} parent=11 // pred_check
          %p203 = pneg %p83
        $region14: #{tpu_custom_call.1} parent=11 // pred_check_branch
          %205 = sbr.rel (%p203) target = $region16
        $region15: #{tpu_custom_call.1} parent=11 // pred_region
          %s207 = ssub.s32 256, 256
          %208 = vsyncadd [#allocation6], %s207
          %s209 = sshll.u32 [#allocation5], 4
          %s210 = int_to_ptr.vmem [resolvable:$true] %s209
          %215 = dma.hbm_to_vmem [thread:$0]  %s1, 256, %s210, [#allocation6], 64, 64, 4
        $region16: #{tpu_custom_call.1} parent=11 // pred_fallthru
          _
        // Predicated region
        $region17: #{tpu_custom_call.1} parent=11 // pred_check
          %p216 = pneg %p104
        $region18: #{tpu_custom_call.1} parent=11 // pred_check_branch
          %218 = sbr.rel (%p216) target = $region20
        $region19: #{tpu_custom_call.1} parent=11 // pred_region
          _
        $region20: #{tpu_custom_call.1} parent=11 // pred_fallthru
          _
      $region12: #{tpu_custom_call.1} parent=5 // pred_fallthru
        _
      %p219 = scmp.lt.s32.totalorder %s22, 2
      // Predicated region
      $region21: #{tpu_custom_call.1} parent=5 // pred_check
        %p220 = pneg %p219
      $region22: #{tpu_custom_call.1} parent=5 // pred_check_branch
        %222 = sbr.rel (%p220) target = $region24
      $region23: #{tpu_custom_call.1} parent=5 // pred_region
        // Predicated region
        $region25: #{tpu_custom_call.1} parent=23 // pred_check
          %p223 = pneg %p56
        $region26: #{tpu_custom_call.1} parent=23 // pred_check_branch
          %225 = sbr.rel (%p223) target = $region28
        $region27: #{tpu_custom_call.1} parent=23 // pred_region
          %s226 = sand.u32 %s46, 1
          %s227 = scalar_lea.sflag [#allocation3], %s226
          %s228 = sand.u32 %s46, 1
          %s229 = smul.addr %s228, 4
          %s230 = scalar_lea.vmem [#allocation2], %s229
          %s232 = ssub.s32 64, 64
          %233 = vsyncadd %s227, %s232
          %s234 = sadd.s32 %s30, %s29
          %s235 = smul.addr %s234, 64
          %s236 = scalar_lea.hbm %s0, %s235
          %s238 = sshll.u32 %s230, 4
          %s239 = int_to_ptr.vmem [resolvable:$true] %s238
          %241 = dma.hbm_to_vmem [thread:$0]  %s236, 64, %s239, %s227
        $region28: #{tpu_custom_call.1} parent=23 // pred_fallthru
          _
      $region24: #{tpu_custom_call.1} parent=5 // pred_fallthru
        _
      %p242 = scmp.le.s32.totalorder 1, %s22
      %p243 = scmp.lt.s32.totalorder %s22, 3
      %p244 = pnand %p242, %p243
      %p245 = pneg %p244
      // Predicated region
      $region29: #{tpu_custom_call.1} parent=5 // pred_check
        _
      $region30: #{tpu_custom_call.1} parent=5 // pred_check_branch
        %247 = sbr.rel (%p244) target = $region32
      $region31: #{tpu_custom_call.1} parent=5 // pred_region
        %s248 = ssub.s32 %s22, 1
        %s249 = sand.u32 %s49, 1
        %s250 = scalar_lea.sflag [#allocation3], %s249
        %s251 = sand.u32 %s49, 1
        %s252 = smul.addr %s251, 4
        %s253 = scalar_lea.vmem [#allocation2], %s252
        // Predicated region
        $region33: #{tpu_custom_call.1} parent=31 // pred_check
          %p254 = pneg %p62
        $region34: #{tpu_custom_call.1} parent=31 // pred_check_branch
          %256 = sbr.rel (%p254) target = $region36
        $region35: #{tpu_custom_call.1} parent=31 // pred_region
          %257 = dma.done %s250, 64
        $region36: #{tpu_custom_call.1} parent=31 // pred_fallthru
          _
        // Predicated region
        $region37: #{tpu_custom_call.1} parent=31 // pred_check
          %p258 = pneg %p83
        $region38: #{tpu_custom_call.1} parent=31 // pred_check_branch
          %260 = sbr.rel (%p258) target = $region40
        $region39: #{tpu_custom_call.1} parent=31 // pred_region
          %261 = dma.done [#allocation6], 256
        $region40: #{tpu_custom_call.1} parent=31 // pred_fallthru
          _
        %s262 = sand.u32 %s49, 1
        %s263 = scalar_lea.sflag [#allocation3], %s262
        %s264 = sand.u32 %s49, 1
        %s265 = smul.addr %s264, 4
        %s266 = scalar_lea.vmem [#allocation2], %s265
        %p267 = pneg %p62
        %p268 = pneg %p59
        %p269 = pneg %p83
        %p270 = pneg %p80
        %p271 = pneg %p104
        %p272 = pneg %p101
        %p273 = pneg %p132
        %p274 = pneg %p129
        %s275 = sand.u32 %s119, 1
        %s276 = scalar_lea.sflag [#allocation4], %s275
        %s277 = sand.u32 %s119, 1
        %s278 = smul.addr %s277, 16
        %s279 = scalar_lea.vmem [#allocation7], %s278
        %p280 = pneg %p160
        %p281 = pneg %p157
        %s282 = sand.u32 %s27, 1
        %s283 = scalar_lea.sflag [#allocation9], %s282
        %s284 = sand.u32 %s147, 1
        %s285 = smul.addr %s284, 16
        %s286 = scalar_lea.vmem [#allocation8], %s285
        %p287 = pneg %p188
        %p288 = pneg %p185
        %s289 = sand.u32 %s27, 1
        %s290 = scalar_lea.sflag [#allocation9], %s289
        %s291 = sand.u32 %s175, 1
        %s292 = smul.addr %s291, 16
        %s293 = scalar_lea.vmem [#allocation10], %s292
        %v295 = vld [vmem:[%s253] sm:$0xf]
        %v296 = vld [vmem:[#allocation5] sm:$0xf]
        %v297 = vld [vmem:[#allocation5 + $0x4] sm:$0xf]
        %v298 = vld [vmem:[#allocation5 + $0x8] sm:$0xf]
        %v299 = vld [vmem:[#allocation5 + $0xc] sm:$0xf]
        %v300 = vld [vmem:[%s2] sm:$0x1]
        %v302 = vlaneseq
        %v303 = vshrl.u32 %v302, 7
        %v304 = vsub.s32 0, %v303
        %v305 = vrot.slane %v300, %v304
        %v311 = vunpack.c.l.b16 %v296
        %v312 = vunpack.c.l.b16 %v297
        %v313 = vunpack.c.l.b16 %v298
        %v314 = vunpack.c.l.b16 %v299
        %v315 = vpack.c.b16 %v312, %v311
        %v316 = vpack.c.b16 %v314, %v313
        %vm319 = vcmask 261120
        %v321 = vsel %vm319, %v295, 0
        %323 = vmatprep.subr.bf16.mxu0 0
        %324 = vmatpush1.bf16.msra.mxu0 0
        %325 = vmatprep.subr.bf16.mxu0 0
        %326 = vmatpush1.bf16.msra.mxu0 0
        %327 = vmatprep.subr.bf16.mxu0 0
        %328 = vmatpush1.bf16.msra.mxu0 0
        %329 = vmatprep.subr.bf16.mxu0 0
        %330 = vmatpush1.bf16.msra.mxu0 0
        %331 = vmatprep.subr.bf16.mxu0 0
        %332 = vmatpush1.bf16.msra.mxu0 0
        %333 = vmatprep.subr.bf16.mxu0 0
        %334 = vmatpush1.bf16.msra.mxu0 0
        %335 = vmatprep.subr.bf16.mxu0 0
        %336 = vmatpush1.bf16.msra.mxu0 %v316
        %337 = vmatprep.subr.bf16.mxu0 0
        %338 = vmatpush1.bf16.msra.mxu0 %v315
        %339 = vmatprep.subr.bf16.mxu0 0
        %340 = vmatpush2.bf16.msra.mxu0 0
        %341 = vmatprep.subr.bf16.mxu0 0
        %342 = vmatpush2.bf16.msra.mxu0 0
        %343 = vmatprep.subr.bf16.mxu0 0
        %344 = vmatpush2.bf16.msra.mxu0 0
        %345 = vmatprep.subr.bf16.mxu0 0
        %346 = vmatpush2.bf16.msra.mxu0 0
        %347 = vmatprep.subr.bf16.mxu0 0
        %348 = vmatpush2.bf16.msra.mxu0 0
        %349 = vmatprep.subr.bf16.mxu0 0
        %350 = vmatpush2.bf16.msra.mxu0 0
        %351 = vmatprep.subr.bf16.mxu0 0
        %352 = vmatpush2.bf16.msra.mxu0 0
        %353 = vmatprep.subr.bf16.mxu0 0
        %354 = vmatpush2.bf16.msra.mxu0 0
        %355 = vmatprep.mubr.bf16.mxu0 0
        %356 = vmatmul.mubr.bf16.gmra.mxu0 %v321
        %v357 = vpop.f32.mrf.mxu0
        %v358 = vadd.f32 %v305, %v357
        %v359 = vpop.f32.mrf.mxu0
        %v360 = vpop.f32.mrf.mxu0
        %v361 = vpop.f32.mrf.mxu0
        %362 = vdwg.mxu0
        %v363 = vmul.f32 %v358, 0.35355338
        %v364 = vpack.c.bf16 %v363, %v363
        %vm365 = vcmask 60416
        %366 = vst.msk [vmem:[%s279] sm:$0xf] %vm365, %v364
        %v367 = vpack.c.bf16 %v358, %v358
        %v369 = vunpack.c.l.b16 %v367
        %v370 = vpack.c.b16 %v369, %v369
        %371 = vrot.lane.b32.xlu0 %v370, 96
        %v372 = vpop.permute.xlu0 %371
        %374 = vst.msk [vmem:[%s286] sm:$0xf] %vm365, %v372
        %375 = vrot.lane.b32.xlu0 %v370, 64
        %v376 = vpop.permute.xlu0 %375
        %378 = vst.msk [vmem:[%s293] sm:$0xf] %vm365, %v376
        %v380 = vunpack.c.l.b16 %v364
        %v381 = vpack.c.b16 %v380, %v380
        %382 = vrot.lane.b32.xlu0 %v381, 120
        %v383 = vpop.permute.xlu0 %382
        %s385 = scalar_lea.vmem %s279, 4 [#allocation7]
        %386 = vst.msk [vmem:[%s385] sm:$0xf] %vm365, %v383
        %387 = vrot.lane.b32.xlu0 %v370, 88
        %v388 = vpop.permute.xlu0 %387
        %s390 = scalar_lea.vmem %s286, 4 [#allocation8]
        %391 = vst.msk [vmem:[%s390] sm:$0xf] %vm365, %v388
        %392 = vrot.lane.b32.xlu0 %v370, 56
        %v393 = vpop.permute.xlu0 %392
        %s395 = scalar_lea.vmem %s293, 4 [#allocation10]
        %396 = vst.msk [vmem:[%s395] sm:$0xf] %vm365, %v393
        %397 = vrot.lane.b32.xlu0 %v381, 112
        %v398 = vpop.permute.xlu0 %397
        %s400 = scalar_lea.vmem %s279, 8 [#allocation7]
        %401 = vst.msk [vmem:[%s400] sm:$0xf] %vm365, %v398
        %402 = vrot.lane.b32.xlu0 %v370, 80
        %v403 = vpop.permute.xlu0 %402
        %s405 = scalar_lea.vmem %s286, 8 [#allocation8]
        %406 = vst.msk [vmem:[%s405] sm:$0xf] %vm365, %v403
        %407 = vrot.lane.b32.xlu0 %v370, 48
        %v408 = vpop.permute.xlu0 %407
        %s410 = scalar_lea.vmem %s293, 8 [#allocation10]
        %411 = vst.msk [vmem:[%s410] sm:$0xf] %vm365, %v408
        %412 = vrot.lane.b32.xlu0 %v381, 104
        %v413 = vpop.permute.xlu0 %412
        %s415 = scalar_lea.vmem %s279, 12 [#allocation7]
        %416 = vst.msk [vmem:[%s415] sm:$0xf] %vm365, %v413
        %417 = vrot.lane.b32.xlu0 %v370, 72
        %v418 = vpop.permute.xlu0 %417
        %s420 = scalar_lea.vmem %s286, 12 [#allocation8]
        %421 = vst.msk [vmem:[%s420] sm:$0xf] %vm365, %v418
        %422 = vrot.lane.b32.xlu0 %v370, 40
        %v423 = vpop.permute.xlu0 %422
        %s425 = scalar_lea.vmem %s293, 12 [#allocation10]
        %426 = vst.msk [vmem:[%s425] sm:$0xf] %vm365, %v423
        %s427 = sand.u32 %s119, 1
        %s428 = scalar_lea.sflag [#allocation4], %s427
        %s429 = sand.u32 %s119, 1
        %s430 = smul.addr %s429, 16
        %s431 = scalar_lea.vmem [#allocation7], %s430
        %s432 = sand.u32 %s27, 1
        %s433 = scalar_lea.sflag [#allocation9], %s432
        %s434 = sand.u32 %s147, 1
        %s435 = smul.addr %s434, 16
        %s436 = scalar_lea.vmem [#allocation8], %s435
        %s437 = sand.u32 %s27, 1
        %s438 = scalar_lea.sflag [#allocation9], %s437
        %s439 = sand.u32 %s175, 1
        %s440 = smul.addr %s439, 16
        %s441 = scalar_lea.vmem [#allocation10], %s440
        // Predicated region
        $region41: #{tpu_custom_call.1} parent=31 // pred_check
          %p442 = pneg %p129
        $region42: #{tpu_custom_call.1} parent=31 // pred_check_branch
          %444 = sbr.rel (%p442) target = $region44
        $region43: #{tpu_custom_call.1} parent=31 // pred_region
          %s446 = ssub.s32 256, 256
          %447 = vsyncadd %s428, %s446
          %s448 = smul.addr %s31, 4
          %s449 = sadd.s32 %s32, %s448
          %s450 = smul.addr %s449, 64
          %s451 = scalar_lea.hbm %s3, %s450
          %s452 = sshll.u32 %s431, 4
          %s453 = int_to_ptr.vmem [resolvable:$true] %s452
          %458 = dma.vmem_to_hbm [thread:$0]  %s453, 256, %s451, %s428, 64, 64, 4
        $region44: #{tpu_custom_call.1} parent=31 // pred_fallthru
          _
        // Predicated region
        $region45: #{tpu_custom_call.1} parent=31 // pred_check
          %p459 = pneg %p157
        $region46: #{tpu_custom_call.1} parent=31 // pred_check_branch
          %461 = sbr.rel (%p459) target = $region48
        $region47: #{tpu_custom_call.1} parent=31 // pred_region
          %s463 = ssub.s32 256, 256
          %464 = vsyncadd %s433, %s463
          %s465 = smul.addr %s31, 4
          %s466 = sadd.s32 %s32, %s465
          %s467 = smul.addr %s466, 64
          %s468 = scalar_lea.hbm %s4, %s467
          %s469 = sshll.u32 %s436, 4
          %s470 = int_to_ptr.vmem [resolvable:$true] %s469
          %475 = dma.vmem_to_hbm [thread:$0]  %s470, 256, %s468, %s433, 64, 64, 4
        $region48: #{tpu_custom_call.1} parent=31 // pred_fallthru
          _
        // Predicated region
        $region49: #{tpu_custom_call.1} parent=31 // pred_check
          %p476 = pneg %p185
        $region50: #{tpu_custom_call.1} parent=31 // pred_check_branch
          %478 = sbr.rel (%p476) target = $region52
        $region51: #{tpu_custom_call.1} parent=31 // pred_region
          %s480 = ssub.s32 256, 256
          %481 = vsyncadd %s438, %s480
          %s482 = smul.addr %s31, 4
          %s483 = sadd.s32 %s32, %s482
          %s484 = smul.addr %s483, 64
          %s485 = scalar_lea.hbm %s5, %s484
          %s486 = sshll.u32 %s441, 4
          %s487 = int_to_ptr.vmem [resolvable:$true] %s486
          %492 = dma.vmem_to_hbm [thread:$0]  %s487, 256, %s485, %s438, 64, 64, 4
        $region52: #{tpu_custom_call.1} parent=31 // pred_fallthru
          _
      $region32: #{tpu_custom_call.1} parent=5 // pred_fallthru
        _
      %p493 = scmp.le.s32.totalorder 2, %s22
      // Predicated region
      $region53: #{tpu_custom_call.1} parent=5 // pred_check
        %p494 = pneg %p493
      $region54: #{tpu_custom_call.1} parent=5 // pred_check_branch
        %496 = sbr.rel (%p494) target = $region56
      $region55: #{tpu_custom_call.1} parent=5 // pred_region
        %s497 = ssub.s32 %s22, 2
        // Predicated region
        $region57: #{tpu_custom_call.1} parent=55 // pred_check
          %p498 = pneg %p135
        $region58: #{tpu_custom_call.1} parent=55 // pred_check_branch
          %500 = sbr.rel (%p498) target = $region60
        $region59: #{tpu_custom_call.1} parent=55 // pred_region
          %s501 = sand.u32 %s120, 1
          %s502 = scalar_lea.sflag [#allocation4], %s501
          %s503 = sand.u32 %s120, 1
          %s504 = smul.addr %s503, 16
          %s505 = scalar_lea.vmem [#allocation7], %s504
          %506 = dma.done %s502, 256
        $region60: #{tpu_custom_call.1} parent=55 // pred_fallthru
          _
        // Predicated region
        $region61: #{tpu_custom_call.1} parent=55 // pred_check
          %p507 = pneg %p163
        $region62: #{tpu_custom_call.1} parent=55 // pred_check_branch
          %509 = sbr.rel (%p507) target = $region64
        $region63: #{tpu_custom_call.1} parent=55 // pred_region
          %s510 = sand.u32 %s28, 1
          %s511 = scalar_lea.sflag [#allocation9], %s510
          %s512 = sand.u32 %s148, 1
          %s513 = smul.addr %s512, 16
          %s514 = scalar_lea.vmem [#allocation8], %s513
          %515 = dma.done %s511, 256
        $region64: #{tpu_custom_call.1} parent=55 // pred_fallthru
          _
        // Predicated region
        $region65: #{tpu_custom_call.1} parent=55 // pred_check
          %p516 = pneg %p191
        $region66: #{tpu_custom_call.1} parent=55 // pred_check_branch
          %518 = sbr.rel (%p516) target = $region68
        $region67: #{tpu_custom_call.1} parent=55 // pred_region
          %s519 = sand.u32 %s28, 1
          %s520 = scalar_lea.sflag [#allocation9], %s519
          %s521 = sand.u32 %s176, 1
          %s522 = smul.addr %s521, 16
          %s523 = scalar_lea.vmem [#allocation10], %s522
          %524 = dma.done %s520, 256
        $region68: #{tpu_custom_call.1} parent=55 // pred_fallthru
          _
      $region56: #{tpu_custom_call.1} parent=5 // pred_fallthru
        _
    $region6: #{tpu_custom_call.1} parent=1 // loop_footer
      %s26 = sadd.s32 1, %s22
    $region7: #{tpu_custom_call.1} parent=1 // loop_footer_branch
      %21 = sbr.rel target = $region3
    $region8: #{tpu_custom_call.1} parent=1 // loop_exit
      _
    %525 = vsyncpa [#allocation3], 1
    %s526 = scalar_lea.sflag [#allocation3], 1
    %527 = vsyncpa %s526, 1
    %528 = vsyncpa [#allocation6], 1
    %529 = vsyncpa [#allocation4], 1
    %s530 = scalar_lea.sflag [#allocation4], 1
    %531 = vsyncpa %s530, 1
    %532 = vsyncpa [#allocation9], 1
    %s533 = scalar_lea.sflag [#allocation9], 1
    %534 = vsyncpa %s533, 1

</llo_original>
